<compile_context>
chip_gen: v5e
topology: v5e:2x2
jax: 0.10.0
libtpu: 0.0.40
codegen_flags: <defaults>
</compile_context>

<pallas_src>
import math

import jax
import jax.numpy as jnp
from jax.experimental import pallas as pl
from jax.experimental.pallas import tpu as pltpu

# ---- model hyper-parameters (small, consistent with the module) ----
B = 2          # batch
LQ = 8         # local sequence length (queries)
LK = 8         # global sequence length (keys / values)
H = 32         # hidden_size
NH = 4         # transformer_num_heads
HD = H // NH   # attention_head_size


def global_attention_kernel(locx_ref, glox_ref,
                            wq_ts_ref, bq_s_ref,   # (H, H) = (scale*Wq).T, (1, H) = scale*bq
                            wkv_ref, bkv_ref,      # (2H, H) = [Wk; Wv], (2H, 1) = [bk; bv]
                            wo_t_ref, bo_ref,      # (H, H) = Wo.T, (1, H)
                            out_ref):              # (B*LQ, H)
    f32 = jnp.float32

    # Q in "normal" (tokens x hidden) layout; 1/sqrt(hd) already folded into Wq/bq.
    q = jnp.dot(locx_ref[...], wq_ts_ref[...],
                preferred_element_type=f32) + bq_s_ref[...]                  # (B*LQ, H)

    # K and V in "transposed" (hidden x tokens) layout from one fused projection:
    #   kv_t = [Wk; Wv] @ glox^T + [bk; bv]   -> heads live on sublanes.
    glox_t = glox_ref[...].T                                                 # (H, B*LK)
    kv_t = jnp.dot(wkv_ref[...], glox_t,
                   preferred_element_type=f32) + bkv_ref[...]                # (2H, B*LK)
    k_t = kv_t[:H, :]                  # (H, B*LK)  vreg-aligned sublane slice
    v_t = kv_t[H:, :]                  # (H, B*LK)

    # Scores for every (batch, head) pair, stacked along sublanes so the softmax
    # below is a single pass.  q slice is (LQ, HD), k_t slice is (HD, LK): the
    # contraction over the head dim needs no in-kernel transposes.
    s_blocks = []
    for b in range(B):
        rq = slice(b * LQ, (b + 1) * LQ)        # query rows of this batch
        ck = slice(b * LK, (b + 1) * LK)        # key/value token columns of this batch
        for h in range(NH):
            hd = slice(h * HD, (h + 1) * HD)    # head slice of the hidden dim
            s_blocks.append(
                jnp.dot(q[rq, hd], k_t[hd, ck], preferred_element_type=f32))  # (LQ, LK)
    s = jnp.concatenate(s_blocks, axis=0)       # (B*NH*LQ, LK)

    # Numerically-stable softmax over keys — one max / exp / sum / reciprocal pass.
    s = s - jnp.max(s, axis=-1, keepdims=True)
    e = jnp.exp(s)
    p = e * pl.reciprocal(jnp.sum(e, axis=-1, keepdims=True), approx=True)   # (B*NH*LQ, LK)
    p_t = p.T                                   # (LK, B*NH*LQ): one transpose serves all blocks

    # Context in transposed layout: ctx_t[h*HD+d, b*LQ+q] = sum_k p[q,k] * v[k, h*HD+d].
    # Heads merge for free along sublanes; batches concatenate along lanes.
    ctx_cols = []
    for b in range(B):
        ck = slice(b * LK, (b + 1) * LK)
        ctx_blocks = []
        for h in range(NH):
            hd = slice(h * HD, (h + 1) * HD)
            pc = slice((b * NH + h) * LQ, (b * NH + h + 1) * LQ)
            ctx_blocks.append(
                jnp.dot(v_t[hd, ck], p_t[:, pc], preferred_element_type=f32))  # (HD, LQ)
        ctx_cols.append(jnp.concatenate(ctx_blocks, axis=0))   # (H, LQ)
    ctx_t = jnp.concatenate(ctx_cols, axis=-1)                 # (H, B*LQ)

    # Output projection back in (tokens x hidden) layout.
    out = jnp.dot(ctx_t.T, wo_t_ref[...],
                  preferred_element_type=f32) + bo_ref[...]                  # (B*LQ, H)
    out_ref[...] = out.astype(out_ref.dtype)


def prepare_params(params):
    """One-time packing / orientation of the weights (outside the hot path)."""
    scale = 1.0 / math.sqrt(HD)
    return {
        "wq_ts": (params["wq"] * scale).T,                               # (H, H)
        "bq_s": params["bq"] * scale,                                    # (1, H)
        "wkv": jnp.concatenate([params["wk"], params["wv"]], axis=0),    # (2H, H)
        "bkv": jnp.concatenate([params["bk"].reshape(H, 1),
                                params["bv"].reshape(H, 1)], axis=0),    # (2H, 1)
        "wo_t": params["wo"].T,                                          # (H, H)
        "bo": params["bo"],                                              # (1, H)
    }


@jax.jit
def global_attention(locx, glox, packed):
    # Flatten batch into rows (free metadata reshape); the kernel handles the
    # whole problem in a single grid step.
    locx2 = locx.reshape(B * LQ, H)
    glox2 = glox.reshape(B * LK, H)

    def full(shape):
        return pl.BlockSpec(shape, lambda i: (0, 0))

    out2 = pl.pallas_call(
        global_attention_kernel,
        out_shape=jax.ShapeDtypeStruct((B * LQ, H), locx.dtype),
        grid=(1,),
        in_specs=[
            full((B * LQ, H)),                    # locx (flattened)
            full((B * LK, H)),                    # glox (flattened)
            full((H, H)), full((1, H)),           # query  (pre-scaled, pre-transposed)
            full((2 * H, H)), full((2 * H, 1)),   # packed key/value
            full((H, H)), full((1, H)),           # out projection (pre-transposed)
        ],
        out_specs=full((B * LQ, H)),
        compiler_params=pltpu.CompilerParams(
            # Single step: nothing worth sharding across TensorCores at this size.
            dimension_semantics=("arbitrary",)),
    )(locx2, glox2,
      packed["wq_ts"], packed["bq_s"],
      packed["wkv"], packed["bkv"],
      packed["wo_t"], packed["bo"])
    return out2.reshape(B, LQ, H)


def reference(locx, glox, params):
    """Pure-JAX reference mirroring the PyTorch forward."""
    def linear(x, w, b):
        return x @ w.T + b  # b is (1, H), broadcasts

    q = linear(locx, params["wq"], params["bq"])     # (B, Lq, H)
    k = linear(glox, params["wk"], params["bk"])     # (B, Lk, H)
    v = linear(glox, params["wv"], params["bv"])     # (B, Lk, H)

    def split_heads(x):
        Bx, L, _ = x.shape
        return x.reshape(Bx, L, NH, HD).transpose(0, 2, 1, 3)   # (B, NH, L, HD)

    qh, kh, vh = split_heads(q), split_heads(k), split_heads(v)
    scores = jnp.einsum("bhqd,bhkd->bhqk", qh, kh) / math.sqrt(HD)
    probs = jax.nn.softmax(scores, axis=-1)
    ctx = jnp.einsum("bhqk,bhkd->bhqd", probs, vh)               # (B, NH, Lq, HD)
    ctx = ctx.transpose(0, 2, 1, 3).reshape(locx.shape[0], LQ, H)
    return linear(ctx, params["wo"], params["bo"])


def init_params(key):
    ks = jax.random.split(key, 8)
    std = 1.0 / math.sqrt(H)
    def w(k):
        return jax.random.uniform(k, (H, H), jnp.float32, -std, std)
    def b(k):
        return jax.random.uniform(k, (1, H), jnp.float32, -std, std)
    return {
        "wq": w(ks[0]), "bq": b(ks[1]),
        "wk": w(ks[2]), "bk": b(ks[3]),
        "wv": w(ks[4]), "bv": b(ks[5]),
        "wo": w(ks[6]), "bo": b(ks[7]),
    }


if __name__ == "__main__":
    key = jax.random.PRNGKey(0)
    kp, kl, kg = jax.random.split(key, 3)

    params = init_params(kp)
    packed = prepare_params(params)
    locx = jax.random.normal(kl, (B, LQ, H), jnp.float32)
    glox = jax.random.normal(kg, (B, LK, H), jnp.float32)

    out = global_attention(locx, glox, packed)
    out = jax.block_until_ready(out)

    ref = reference(locx, glox, params)
    assert out.shape == (B, LQ, H)
    # Tolerance loosened slightly because the softmax denominator uses the
    # hardware approximate reciprocal (pl.reciprocal(..., approx=True)).
    assert jnp.allclose(out, ref, atol=1e-2, rtol=1e-2), "mismatch vs reference"

    print("KERNEL_OK")
</pallas_src>

<mosaic_0001>
module attributes {stable_mosaic.version = 11 : i64} {
  func.func @global_attention_kernel(%arg0: i32, %arg1: memref<16x32xf32, #tpu.memory_space<vmem>>, %arg2: memref<16x32xf32, #tpu.memory_space<vmem>>, %arg3: memref<32x32xf32, #tpu.memory_space<vmem>>, %arg4: memref<1x32xf32, #tpu.memory_space<vmem>>, %arg5: memref<64x32xf32, #tpu.memory_space<vmem>>, %arg6: memref<64x1xf32, #tpu.memory_space<vmem>>, %arg7: memref<32x32xf32, #tpu.memory_space<vmem>>, %arg8: memref<1x32xf32, #tpu.memory_space<vmem>>, %arg9: memref<16x32xf32, #tpu.memory_space<vmem>>) attributes {dimension_semantics = [#tpu.dimension_semantics<arbitrary>], iteration_bounds = array<i64: 1>, scalar_prefetch = 0 : i64, scratch_operands = 0 : i64, tpu.core_type = #tpu.core_type<tc>, window_params = [{pipeline_mode = #tpu.pipeline_mode<synchronous>, transform_indices = @transform_0, window_bounds = array<i64: 16, 32>}, {pipeline_mode = #tpu.pipeline_mode<synchronous>, transform_indices = @transform_1, window_bounds = array<i64: 16, 32>}, {pipeline_mode = #tpu.pipeline_mode<synchronous>, transform_indices = @transform_2, window_bounds = array<i64: 32, 32>}, {pipeline_mode = #tpu.pipeline_mode<synchronous>, transform_indices = @transform_3, window_bounds = array<i64: 1, 32>}, {pipeline_mode = #tpu.pipeline_mode<synchronous>, transform_indices = @transform_4, window_bounds = array<i64: 64, 32>}, {pipeline_mode = #tpu.pipeline_mode<synchronous>, transform_indices = @transform_5, window_bounds = array<i64: 64, 1>}, {pipeline_mode = #tpu.pipeline_mode<synchronous>, transform_indices = @transform_6, window_bounds = array<i64: 32, 32>}, {pipeline_mode = #tpu.pipeline_mode<synchronous>, transform_indices = @transform_7, window_bounds = array<i64: 1, 32>}, {pipeline_mode = #tpu.pipeline_mode<synchronous>, transform_indices = @transform_8, window_bounds = array<i64: 16, 32>}]} {
    %c0 = arith.constant 0 : index
    %c0_0 = arith.constant 0 : index
    %0 = vector.load %arg1[%c0, %c0_0] : memref<16x32xf32, #tpu.memory_space<vmem>>, vector<16x32xf32>
    %c0_1 = arith.constant 0 : index
    %c0_2 = arith.constant 0 : index
    %1 = vector.load %arg3[%c0_1, %c0_2] : memref<32x32xf32, #tpu.memory_space<vmem>>, vector<32x32xf32>
    %cst = arith.constant dense<0.000000e+00> : vector<16x32xf32>
    %2 = tpu.matmul %0, %1, %cst {dimension_numbers = #tpu.dot_dimension_numbers<[1], [0], [0], [1], [0, 0, 1, 1], [], []>} : vector<16x32xf32>, vector<32x32xf32>, vector<16x32xf32> -> vector<16x32xf32>
    %c0_3 = arith.constant 0 : index
    %c0_4 = arith.constant 0 : index
    %3 = vector.load %arg4[%c0_3, %c0_4] : memref<1x32xf32, #tpu.memory_space<vmem>>, vector<1x32xf32>
    %4 = vector.broadcast %3 : vector<1x32xf32> to vector<16x32xf32>
    %5 = arith.addf %2, %4 : vector<16x32xf32>
    %c0_5 = arith.constant 0 : index
    %c0_6 = arith.constant 0 : index
    %6 = vector.load %arg2[%c0_5, %c0_6] : memref<16x32xf32, #tpu.memory_space<vmem>>, vector<16x32xf32>
    %7 = tpu.transpose %6, [1, 0] : vector<16x32xf32> -> vector<32x16xf32>
    %c0_7 = arith.constant 0 : index
    %c0_8 = arith.constant 0 : index
    %8 = vector.load %arg5[%c0_7, %c0_8] : memref<64x32xf32, #tpu.memory_space<vmem>>, vector<64x32xf32>
    %cst_9 = arith.constant dense<0.000000e+00> : vector<64x16xf32>
    %9 = tpu.matmul %8, %7, %cst_9 {dimension_numbers = #tpu.dot_dimension_numbers<[1], [0], [0], [1], [0, 0, 1, 1], [], []>} : vector<64x32xf32>, vector<32x16xf32>, vector<64x16xf32> -> vector<64x16xf32>
    %c0_10 = arith.constant 0 : index
    %c0_11 = arith.constant 0 : index
    %10 = vector.load %arg6[%c0_10, %c0_11] : memref<64x1xf32, #tpu.memory_space<vmem>>, vector<64x1xf32>
    %11 = vector.broadcast %10 : vector<64x1xf32> to vector<64x16xf32>
    %12 = arith.addf %9, %11 : vector<64x16xf32>
    %13 = vector.extract_strided_slice %12 {offsets = [0, 0], sizes = [32, 16], strides = [1, 1]} : vector<64x16xf32> to vector<32x16xf32>
    %14 = vector.extract_strided_slice %12 {offsets = [32, 0], sizes = [32, 16], strides = [1, 1]} : vector<64x16xf32> to vector<32x16xf32>
    %15 = vector.extract_strided_slice %5 {offsets = [0, 0], sizes = [8, 8], strides = [1, 1]} : vector<16x32xf32> to vector<8x8xf32>
    %16 = vector.extract_strided_slice %13 {offsets = [0, 0], sizes = [8, 8], strides = [1, 1]} : vector<32x16xf32> to vector<8x8xf32>
    %cst_12 = arith.constant dense<0.000000e+00> : vector<8x8xf32>
    %17 = tpu.matmul %15, %16, %cst_12 {dimension_numbers = #tpu.dot_dimension_numbers<[1], [0], [0], [1], [0, 0, 1, 1], [], []>} : vector<8x8xf32>, vector<8x8xf32>, vector<8x8xf32> -> vector<8x8xf32>
    %18 = vector.extract_strided_slice %5 {offsets = [0, 8], sizes = [8, 8], strides = [1, 1]} : vector<16x32xf32> to vector<8x8xf32>
    %19 = vector.extract_strided_slice %13 {offsets = [8, 0], sizes = [8, 8], strides = [1, 1]} : vector<32x16xf32> to vector<8x8xf32>
    %cst_13 = arith.constant dense<0.000000e+00> : vector<8x8xf32>
    %20 = tpu.matmul %18, %19, %cst_13 {dimension_numbers = #tpu.dot_dimension_numbers<[1], [0], [0], [1], [0, 0, 1, 1], [], []>} : vector<8x8xf32>, vector<8x8xf32>, vector<8x8xf32> -> vector<8x8xf32>
    %21 = vector.extract_strided_slice %5 {offsets = [0, 16], sizes = [8, 8], strides = [1, 1]} : vector<16x32xf32> to vector<8x8xf32>
    %22 = vector.extract_strided_slice %13 {offsets = [16, 0], sizes = [8, 8], strides = [1, 1]} : vector<32x16xf32> to vector<8x8xf32>
    %cst_14 = arith.constant dense<0.000000e+00> : vector<8x8xf32>
    %23 = tpu.matmul %21, %22, %cst_14 {dimension_numbers = #tpu.dot_dimension_numbers<[1], [0], [0], [1], [0, 0, 1, 1], [], []>} : vector<8x8xf32>, vector<8x8xf32>, vector<8x8xf32> -> vector<8x8xf32>
    %24 = vector.extract_strided_slice %5 {offsets = [0, 24], sizes = [8, 8], strides = [1, 1]} : vector<16x32xf32> to vector<8x8xf32>
    %25 = vector.extract_strided_slice %13 {offsets = [24, 0], sizes = [8, 8], strides = [1, 1]} : vector<32x16xf32> to vector<8x8xf32>
    %cst_15 = arith.constant dense<0.000000e+00> : vector<8x8xf32>
    %26 = tpu.matmul %24, %25, %cst_15 {dimension_numbers = #tpu.dot_dimension_numbers<[1], [0], [0], [1], [0, 0, 1, 1], [], []>} : vector<8x8xf32>, vector<8x8xf32>, vector<8x8xf32> -> vector<8x8xf32>
    %27 = vector.extract_strided_slice %5 {offsets = [8, 0], sizes = [8, 8], strides = [1, 1]} : vector<16x32xf32> to vector<8x8xf32>
    %28 = vector.extract_strided_slice %13 {offsets = [0, 8], sizes = [8, 8], strides = [1, 1]} : vector<32x16xf32> to vector<8x8xf32>
    %cst_16 = arith.constant dense<0.000000e+00> : vector<8x8xf32>
    %29 = tpu.matmul %27, %28, %cst_16 {dimension_numbers = #tpu.dot_dimension_numbers<[1], [0], [0], [1], [0, 0, 1, 1], [], []>} : vector<8x8xf32>, vector<8x8xf32>, vector<8x8xf32> -> vector<8x8xf32>
    %30 = vector.extract_strided_slice %5 {offsets = [8, 8], sizes = [8, 8], strides = [1, 1]} : vector<16x32xf32> to vector<8x8xf32>
    %31 = vector.extract_strided_slice %13 {offsets = [8, 8], sizes = [8, 8], strides = [1, 1]} : vector<32x16xf32> to vector<8x8xf32>
    %cst_17 = arith.constant dense<0.000000e+00> : vector<8x8xf32>
    %32 = tpu.matmul %30, %31, %cst_17 {dimension_numbers = #tpu.dot_dimension_numbers<[1], [0], [0], [1], [0, 0, 1, 1], [], []>} : vector<8x8xf32>, vector<8x8xf32>, vector<8x8xf32> -> vector<8x8xf32>
    %33 = vector.extract_strided_slice %5 {offsets = [8, 16], sizes = [8, 8], strides = [1, 1]} : vector<16x32xf32> to vector<8x8xf32>
    %34 = vector.extract_strided_slice %13 {offsets = [16, 8], sizes = [8, 8], strides = [1, 1]} : vector<32x16xf32> to vector<8x8xf32>
    %cst_18 = arith.constant dense<0.000000e+00> : vector<8x8xf32>
    %35 = tpu.matmul %33, %34, %cst_18 {dimension_numbers = #tpu.dot_dimension_numbers<[1], [0], [0], [1], [0, 0, 1, 1], [], []>} : vector<8x8xf32>, vector<8x8xf32>, vector<8x8xf32> -> vector<8x8xf32>
    %36 = vector.extract_strided_slice %5 {offsets = [8, 24], sizes = [8, 8], strides = [1, 1]} : vector<16x32xf32> to vector<8x8xf32>
    %37 = vector.extract_strided_slice %13 {offsets = [24, 8], sizes = [8, 8], strides = [1, 1]} : vector<32x16xf32> to vector<8x8xf32>
    %cst_19 = arith.constant dense<0.000000e+00> : vector<8x8xf32>
    %38 = tpu.matmul %36, %37, %cst_19 {dimension_numbers = #tpu.dot_dimension_numbers<[1], [0], [0], [1], [0, 0, 1, 1], [], []>} : vector<8x8xf32>, vector<8x8xf32>, vector<8x8xf32> -> vector<8x8xf32>
    %39 = tpu.concatenate %17, %20, %23, %26, %29, %32, %35, %38 in 0 : vector<8x8xf32>, vector<8x8xf32>, vector<8x8xf32>, vector<8x8xf32>, vector<8x8xf32>, vector<8x8xf32>, vector<8x8xf32>, vector<8x8xf32> -> vector<64x8xf32>
    %cst_20 = arith.constant dense<0xFF800000> : vector<64xf32>
    %40 = vector.multi_reduction <maximumf>, %39, %cst_20 [1] : vector<64x8xf32> to vector<64xf32>
    %41 = vector.shape_cast %40 : vector<64xf32> to vector<64x1xf32>
    %42 = vector.broadcast %41 : vector<64x1xf32> to vector<64x8xf32>
    %43 = arith.subf %39, %42 : vector<64x8xf32>
    %44 = math.exp %43 : vector<64x8xf32>
    %cst_21 = arith.constant dense<0.000000e+00> : vector<64xf32>
    %45 = vector.multi_reduction <add>, %44, %cst_21 [1] : vector<64x8xf32> to vector<64xf32>
    %46 = vector.shape_cast %45 : vector<64xf32> to vector<64x1xf32>
    %47 = tpu.reciprocal %46 {approx = true} : vector<64x1xf32> -> vector<64x1xf32>
    %48 = vector.broadcast %47 : vector<64x1xf32> to vector<64x8xf32>
    %49 = arith.mulf %44, %48 : vector<64x8xf32>
    %50 = tpu.transpose %49, [1, 0] : vector<64x8xf32> -> vector<8x64xf32>
    %51 = vector.extract_strided_slice %14 {offsets = [0, 0], sizes = [8, 8], strides = [1, 1]} : vector<32x16xf32> to vector<8x8xf32>
    %52 = vector.extract_strided_slice %50 {offsets = [0, 0], sizes = [8, 8], strides = [1, 1]} : vector<8x64xf32> to vector<8x8xf32>
    %cst_22 = arith.constant dense<0.000000e+00> : vector<8x8xf32>
    %53 = tpu.matmul %51, %52, %cst_22 {dimension_numbers = #tpu.dot_dimension_numbers<[1], [0], [0], [1], [0, 0, 1, 1], [], []>} : vector<8x8xf32>, vector<8x8xf32>, vector<8x8xf32> -> vector<8x8xf32>
    %54 = vector.extract_strided_slice %14 {offsets = [8, 0], sizes = [8, 8], strides = [1, 1]} : vector<32x16xf32> to vector<8x8xf32>
    %55 = vector.extract_strided_slice %50 {offsets = [0, 8], sizes = [8, 8], strides = [1, 1]} : vector<8x64xf32> to vector<8x8xf32>
    %cst_23 = arith.constant dense<0.000000e+00> : vector<8x8xf32>
    %56 = tpu.matmul %54, %55, %cst_23 {dimension_numbers = #tpu.dot_dimension_numbers<[1], [0], [0], [1], [0, 0, 1, 1], [], []>} : vector<8x8xf32>, vector<8x8xf32>, vector<8x8xf32> -> vector<8x8xf32>
    %57 = vector.extract_strided_slice %14 {offsets = [16, 0], sizes = [8, 8], strides = [1, 1]} : vector<32x16xf32> to vector<8x8xf32>
    %58 = vector.extract_strided_slice %50 {offsets = [0, 16], sizes = [8, 8], strides = [1, 1]} : vector<8x64xf32> to vector<8x8xf32>
    %cst_24 = arith.constant dense<0.000000e+00> : vector<8x8xf32>
    %59 = tpu.matmul %57, %58, %cst_24 {dimension_numbers = #tpu.dot_dimension_numbers<[1], [0], [0], [1], [0, 0, 1, 1], [], []>} : vector<8x8xf32>, vector<8x8xf32>, vector<8x8xf32> -> vector<8x8xf32>
    %60 = vector.extract_strided_slice %14 {offsets = [24, 0], sizes = [8, 8], strides = [1, 1]} : vector<32x16xf32> to vector<8x8xf32>
    %61 = vector.extract_strided_slice %50 {offsets = [0, 24], sizes = [8, 8], strides = [1, 1]} : vector<8x64xf32> to vector<8x8xf32>
    %cst_25 = arith.constant dense<0.000000e+00> : vector<8x8xf32>
    %62 = tpu.matmul %60, %61, %cst_25 {dimension_numbers = #tpu.dot_dimension_numbers<[1], [0], [0], [1], [0, 0, 1, 1], [], []>} : vector<8x8xf32>, vector<8x8xf32>, vector<8x8xf32> -> vector<8x8xf32>
    %63 = tpu.concatenate %53, %56, %59, %62 in 0 : vector<8x8xf32>, vector<8x8xf32>, vector<8x8xf32>, vector<8x8xf32> -> vector<32x8xf32>
    %64 = vector.extract_strided_slice %14 {offsets = [0, 8], sizes = [8, 8], strides = [1, 1]} : vector<32x16xf32> to vector<8x8xf32>
    %65 = vector.extract_strided_slice %50 {offsets = [0, 32], sizes = [8, 8], strides = [1, 1]} : vector<8x64xf32> to vector<8x8xf32>
    %cst_26 = arith.constant dense<0.000000e+00> : vector<8x8xf32>
    %66 = tpu.matmul %64, %65, %cst_26 {dimension_numbers = #tpu.dot_dimension_numbers<[1], [0], [0], [1], [0, 0, 1, 1], [], []>} : vector<8x8xf32>, vector<8x8xf32>, vector<8x8xf32> -> vector<8x8xf32>
    %67 = vector.extract_strided_slice %14 {offsets = [8, 8], sizes = [8, 8], strides = [1, 1]} : vector<32x16xf32> to vector<8x8xf32>
    %68 = vector.extract_strided_slice %50 {offsets = [0, 40], sizes = [8, 8], strides = [1, 1]} : vector<8x64xf32> to vector<8x8xf32>
    %cst_27 = arith.constant dense<0.000000e+00> : vector<8x8xf32>
    %69 = tpu.matmul %67, %68, %cst_27 {dimension_numbers = #tpu.dot_dimension_numbers<[1], [0], [0], [1], [0, 0, 1, 1], [], []>} : vector<8x8xf32>, vector<8x8xf32>, vector<8x8xf32> -> vector<8x8xf32>
    %70 = vector.extract_strided_slice %14 {offsets = [16, 8], sizes = [8, 8], strides = [1, 1]} : vector<32x16xf32> to vector<8x8xf32>
    %71 = vector.extract_strided_slice %50 {offsets = [0, 48], sizes = [8, 8], strides = [1, 1]} : vector<8x64xf32> to vector<8x8xf32>
    %cst_28 = arith.constant dense<0.000000e+00> : vector<8x8xf32>
    %72 = tpu.matmul %70, %71, %cst_28 {dimension_numbers = #tpu.dot_dimension_numbers<[1], [0], [0], [1], [0, 0, 1, 1], [], []>} : vector<8x8xf32>, vector<8x8xf32>, vector<8x8xf32> -> vector<8x8xf32>
    %73 = vector.extract_strided_slice %14 {offsets = [24, 8], sizes = [8, 8], strides = [1, 1]} : vector<32x16xf32> to vector<8x8xf32>
    %74 = vector.extract_strided_slice %50 {offsets = [0, 56], sizes = [8, 8], strides = [1, 1]} : vector<8x64xf32> to vector<8x8xf32>
    %cst_29 = arith.constant dense<0.000000e+00> : vector<8x8xf32>
    %75 = tpu.matmul %73, %74, %cst_29 {dimension_numbers = #tpu.dot_dimension_numbers<[1], [0], [0], [1], [0, 0, 1, 1], [], []>} : vector<8x8xf32>, vector<8x8xf32>, vector<8x8xf32> -> vector<8x8xf32>
    %76 = tpu.concatenate %66, %69, %72, %75 in 0 : vector<8x8xf32>, vector<8x8xf32>, vector<8x8xf32>, vector<8x8xf32> -> vector<32x8xf32>
    %77 = tpu.concatenate %63, %76 in 1 : vector<32x8xf32>, vector<32x8xf32> -> vector<32x16xf32>
    %78 = tpu.transpose %77, [1, 0] : vector<32x16xf32> -> vector<16x32xf32>
    %c0_30 = arith.constant 0 : index
    %c0_31 = arith.constant 0 : index
    %79 = vector.load %arg7[%c0_30, %c0_31] : memref<32x32xf32, #tpu.memory_space<vmem>>, vector<32x32xf32>
    %cst_32 = arith.constant dense<0.000000e+00> : vector<16x32xf32>
    %80 = tpu.matmul %78, %79, %cst_32 {dimension_numbers = #tpu.dot_dimension_numbers<[1], [0], [0], [1], [0, 0, 1, 1], [], []>} : vector<16x32xf32>, vector<32x32xf32>, vector<16x32xf32> -> vector<16x32xf32>
    %c0_33 = arith.constant 0 : index
    %c0_34 = arith.constant 0 : index
    %81 = vector.load %arg8[%c0_33, %c0_34] : memref<1x32xf32, #tpu.memory_space<vmem>>, vector<1x32xf32>
    %82 = vector.broadcast %81 : vector<1x32xf32> to vector<16x32xf32>
    %83 = arith.addf %80, %82 : vector<16x32xf32>
    %c0_35 = arith.constant 0 : index
    %c0_36 = arith.constant 0 : index
    %84 = vector.load %arg9[%c0_35, %c0_36] : memref<16x32xf32, #tpu.memory_space<vmem>>, vector<16x32xf32>
    tpu.vector_store %arg9[%c0_35, %c0_36], %83 {strides = array<i32>} : memref<16x32xf32, #tpu.memory_space<vmem>>, vector<16x32xf32>,
    return
  }
  func.func @transform_0(%arg0: i32) -> (i32, i32) {
    %c0_i32 = arith.constant 0 : i32
    %c0_i32_0 = arith.constant 0 : i32
    %c0_i32_1 = arith.constant 0 : i32
    return %c0_i32, %c0_i32_0 : i32, i32
  }
  func.func @transform_1(%arg0: i32) -> (i32, i32) {
    %c0_i32 = arith.constant 0 : i32
    %c0_i32_0 = arith.constant 0 : i32
    %c0_i32_1 = arith.constant 0 : i32
    return %c0_i32, %c0_i32_0 : i32, i32
  }
  func.func @transform_2(%arg0: i32) -> (i32, i32) {
    %c0_i32 = arith.constant 0 : i32
    %c0_i32_0 = arith.constant 0 : i32
    %c0_i32_1 = arith.constant 0 : i32
    return %c0_i32, %c0_i32_0 : i32, i32
  }
  func.func @transform_3(%arg0: i32) -> (i32, i32) {
    %c0_i32 = arith.constant 0 : i32
    %c0_i32_0 = arith.constant 0 : i32
    %c0_i32_1 = arith.constant 0 : i32
    return %c0_i32, %c0_i32_0 : i32, i32
  }
  func.func @transform_4(%arg0: i32) -> (i32, i32) {
    %c0_i32 = arith.constant 0 : i32
    %c0_i32_0 = arith.constant 0 : i32
    %c0_i32_1 = arith.constant 0 : i32
    return %c0_i32, %c0_i32_0 : i32, i32
  }
  func.func @transform_5(%arg0: i32) -> (i32, i32) {
    %c0_i32 = arith.constant 0 : i32
    %c0_i32_0 = arith.constant 0 : i32
    %c0_i32_1 = arith.constant 0 : i32
    return %c0_i32, %c0_i32_0 : i32, i32
  }
  func.func @transform_6(%arg0: i32) -> (i32, i32) {
    %c0_i32 = arith.constant 0 : i32
    %c0_i32_0 = arith.constant 0 : i32
    %c0_i32_1 = arith.constant 0 : i32
    return %c0_i32, %c0_i32_0 : i32, i32
  }
  func.func @transform_7(%arg0: i32) -> (i32, i32) {
    %c0_i32 = arith.constant 0 : i32
    %c0_i32_0 = arith.constant 0 : i32
    %c0_i32_1 = arith.constant 0 : i32
    return %c0_i32, %c0_i32_0 : i32, i32
  }
  func.func @transform_8(%arg0: i32) -> (i32, i32) {
    %c0_i32 = arith.constant 0 : i32
    %c0_i32_0 = arith.constant 0 : i32
    %c0_i32_1 = arith.constant 0 : i32
    return %c0_i32, %c0_i32_0 : i32, i32
  }
}

</mosaic_0001>

<llo_original>
// kernel: global_attention.1
$region0: #{global_attention.1}
  #allocation0 [shape = 'u32[]', space=smem, size = 0x4, offset = 0x4, fixed_abs, tag = 'smem constant byte address 0x4 - core index']
  #allocation1 [shape = 'u32[72,128]{1,0:T(1,128)}', space=vmem, size = 0x9000, scoped, tag = 'internal scratch']
  %s0 = inlined_call_operand.vmem [shape: f32[16,32], index: 0, kind: input, shape index: {}]
  %s1 = inlined_call_operand.vmem [shape: f32[16,32], index: 1, kind: input, shape index: {}]
  %s2 = inlined_call_operand.vmem [shape: f32[32,32], index: 2, kind: input, shape index: {}]
  %s3 = inlined_call_operand.vmem [shape: f32[1,32], index: 3, kind: input, shape index: {}]
  %s4 = inlined_call_operand.vmem [shape: f32[64,32], index: 4, kind: input, shape index: {}]
  %s5 = inlined_call_operand.vmem [shape: f32[64,1], index: 5, kind: input, shape index: {}]
  %s6 = inlined_call_operand.vmem [shape: f32[32,32], index: 6, kind: input, shape index: {}]
  %s7 = inlined_call_operand.vmem [shape: f32[1,32], index: 7, kind: input, shape index: {}]
  %s8 = inlined_call_operand.hbm [shape: f32[16,32], index: 8, kind: output, shape index: {}]
  %s9 = sld [smem:[#allocation0]]
  $region42: #{global_attention.1} parent=0
    _
  %s11 = ssub.s32 1, %s9
  %s12 = scalar_select 0, %s11, %s9
  $region1: #{global_attention.1} parent=0
    #allocation2 [shape = 'u8[8192]{0}', space=vmem, size = 0x2000, scoped, tag = 'output window, operand 0, single buffered']
    #allocation3 [shape = 's32[1]{0}', space=sflag, size = 0x4, scoped, tag = 'scoped memory for global_attention.1']
    %13 = vsyncpa [#allocation3], 0
    // Predicated region
    $region2: #{global_attention.1} parent=1 // pred_check
      _
    $region3: #{global_attention.1} parent=1 // pred_check_branch
      %15 = sbr.rel (0) target = $region5
    $region4: #{global_attention.1} parent=1 // pred_region
      _
    $region5: #{global_attention.1} parent=1 // pred_fallthru
      _
    // Predicated region
    $region6: #{global_attention.1} parent=1 // pred_check
      _
    $region7: #{global_attention.1} parent=1 // pred_check_branch
      %17 = sbr.rel (0) target = $region9
    $region8: #{global_attention.1} parent=1 // pred_region
      _
    $region9: #{global_attention.1} parent=1 // pred_fallthru
      _
    // Predicated region
    $region10: #{global_attention.1} parent=1 // pred_check
      _
    $region11: #{global_attention.1} parent=1 // pred_check_branch
      %19 = sbr.rel (0) target = $region13
    $region12: #{global_attention.1} parent=1 // pred_region
      _
    $region13: #{global_attention.1} parent=1 // pred_fallthru
      _
    // Predicated region
    $region14: #{global_attention.1} parent=1 // pred_check
      _
    $region15: #{global_attention.1} parent=1 // pred_check_branch
      %21 = sbr.rel (0) target = $region17
    $region16: #{global_attention.1} parent=1 // pred_region
      _
    $region17: #{global_attention.1} parent=1 // pred_fallthru
      _
    // Predicated region
    $region18: #{global_attention.1} parent=1 // pred_check
      _
    $region19: #{global_attention.1} parent=1 // pred_check_branch
      %23 = sbr.rel (0) target = $region21
    $region20: #{global_attention.1} parent=1 // pred_region
      _
    $region21: #{global_attention.1} parent=1 // pred_fallthru
      _
    // Predicated region
    $region22: #{global_attention.1} parent=1 // pred_check
      _
    $region23: #{global_attention.1} parent=1 // pred_check_branch
      %25 = sbr.rel (0) target = $region25
    $region24: #{global_attention.1} parent=1 // pred_region
      _
    $region25: #{global_attention.1} parent=1 // pred_fallthru
      _
    // Predicated region
    $region26: #{global_attention.1} parent=1 // pred_check
      _
    $region27: #{global_attention.1} parent=1 // pred_check_branch
      %27 = sbr.rel (0) target = $region29
    $region28: #{global_attention.1} parent=1 // pred_region
      _
    $region29: #{global_attention.1} parent=1 // pred_fallthru
      _
    // Predicated region
    $region30: #{global_attention.1} parent=1 // pred_check
      _
    $region31: #{global_attention.1} parent=1 // pred_check_branch
      %29 = sbr.rel (0) target = $region33
    $region32: #{global_attention.1} parent=1 // pred_region
      _
    $region33: #{global_attention.1} parent=1 // pred_fallthru
      _
    %v30 = vld [vmem:[%s0] sm:$0xff]
    %v31 = vld [vmem:[%s0 + $0x8] sm:$0xff]
    %v32 = vld [vmem:[%s2] sm:$0xff]
    %v33 = vld [vmem:[%s2 + $0x8] sm:$0xff]
    %v34 = vld [vmem:[%s2 + $0x10] sm:$0xff]
    %v35 = vld [vmem:[%s2 + $0x18] sm:$0xff]
    %v36 = vld [vmem:[%s3] sm:$0x1]
    %v38 = vperm.slane %v36, 0
    %vm40 = vcmask 261120
    %v42 = vsel %vm40, %v30, 0
    %v45 = vsel %vm40, %v31, 0
    %47 = vmatpush.msra.mxu0 0.0
    %48 = vmatpush.msra.mxu0 0.0
    %49 = vmatpush.msra.mxu0 0.0
    %50 = vmatpush.msra.mxu0 0.0
    %51 = vmatpush.msra.mxu0 0.0
    %52 = vmatpush.msra.mxu0 0.0
    %53 = vmatpush.msra.mxu0 0.0
    %54 = vmatpush.msra.mxu0 0.0
    %55 = vmatpush.msra.mxu0 0.0
    %56 = vmatpush.msra.mxu0 0.0
    %57 = vmatpush.msra.mxu0 0.0
    %58 = vmatpush.msra.mxu0 0.0
    %59 = vmatpush.msra.mxu0 %v35
    %60 = vmatpush.msra.mxu0 %v34
    %61 = vmatpush.msra.mxu0 %v33
    %62 = vmatpush.msra.mxu0 %v32
    %63 = vmatmul.f32.gmra.mxu0 %v42
    %v64 = vpop.f32.mrf.mxu0
    %v65 = vadd.f32 %v38, %v64
    %66 = vmatmul.f32.gmra.mxu0 %v45
    %v67 = vpop.f32.mrf.mxu0
    %v68 = vadd.f32 %v38, %v67
    %69 = vdwg.mxu0
    %v70 = vld [vmem:[%s1] sm:$0xff]
    %v71 = vld [vmem:[%s1 + $0x8] sm:$0xff]
    %v72 = vld [vmem:[%s4] sm:$0xff]
    %v73 = vld [vmem:[%s4 + $0x8] sm:$0xff]
    %v74 = vld [vmem:[%s4 + $0x10] sm:$0xff]
    %v75 = vld [vmem:[%s4 + $0x18] sm:$0xff]
    %v76 = vld [vmem:[%s4 + $0x20] sm:$0xff]
    %v77 = vld [vmem:[%s4 + $0x28] sm:$0xff]
    %v78 = vld [vmem:[%s4 + $0x30] sm:$0xff]
    %v79 = vld [vmem:[%s4 + $0x38] sm:$0xff]
    %v80 = vld [vmem:[%s5] sm:$0xff]
    %v81 = vld [vmem:[%s5 + $0x8] sm:$0xff]
    %v82 = vld [vmem:[%s5 + $0x10] sm:$0xff]
    %v83 = vld [vmem:[%s5 + $0x18] sm:$0xff]
    %v84 = vld [vmem:[%s5 + $0x20] sm:$0xff]
    %v85 = vld [vmem:[%s5 + $0x28] sm:$0xff]
    %v86 = vld [vmem:[%s5 + $0x30] sm:$0xff]
    %v87 = vld [vmem:[%s5 + $0x38] sm:$0xff]
    %89 = vset.pattern.permute.xlu0 0
    %90 = vperm.xlu0 %89, %v80
    %v91 = vpop.permute.xlu0 %90
    %94 = vset.pattern.permute.xlu0 0
    %95 = vperm.xlu0 %94, %v81
    %v96 = vpop.permute.xlu0 %95
    %99 = vset.pattern.permute.xlu0 0
    %100 = vperm.xlu0 %99, %v82
    %v101 = vpop.permute.xlu0 %100
    %104 = vset.pattern.permute.xlu0 0
    %105 = vperm.xlu0 %104, %v83
    %v106 = vpop.permute.xlu0 %105
    %109 = vset.pattern.permute.xlu0 0
    %110 = vperm.xlu0 %109, %v84
    %v111 = vpop.permute.xlu0 %110
    %114 = vset.pattern.permute.xlu0 0
    %115 = vperm.xlu0 %114, %v85
    %v116 = vpop.permute.xlu0 %115
    %119 = vset.pattern.permute.xlu0 0
    %120 = vperm.xlu0 %119, %v86
    %v121 = vpop.permute.xlu0 %120
    %124 = vset.pattern.permute.xlu0 0
    %125 = vperm.xlu0 %124, %v87
    %v126 = vpop.permute.xlu0 %125
    %v129 = vsel %vm40, %v72, 0
    %v132 = vsel %vm40, %v73, 0
    %v135 = vsel %vm40, %v74, 0
    %v138 = vsel %vm40, %v75, 0
    %v141 = vsel %vm40, %v76, 0
    %v144 = vsel %vm40, %v77, 0
    %v147 = vsel %vm40, %v78, 0
    %v150 = vsel %vm40, %v79, 0
    %v153 = vsel %vm40, %v70, 0
    %v156 = vsel %vm40, %v71, 0
    %158 = vmatpush.xpose.msra.mxu0 0.0
    %159 = vmatpush.xpose.msra.mxu0 0.0
    %160 = vmatpush.xpose.msra.mxu0 0.0
    %161 = vmatpush.xpose.msra.mxu0 0.0
    %162 = vmatpush.xpose.msra.mxu0 0.0
    %163 = vmatpush.xpose.msra.mxu0 0.0
    %164 = vmatpush.xpose.msra.mxu0 0.0
    %165 = vmatpush.xpose.msra.mxu0 0.0
    %166 = vmatpush.xpose.msra.mxu0 0.0
    %167 = vmatpush.xpose.msra.mxu0 0.0
    %168 = vmatpush.xpose.msra.mxu0 0.0
    %169 = vmatpush.xpose.msra.mxu0 0.0
    %170 = vmatpush.xpose.msra.mxu0 0.0
    %171 = vmatpush.xpose.msra.mxu0 0.0
    %172 = vmatpush.xpose.msra.mxu0 %v156
    %173 = vmatpush.xpose.msra.mxu0 %v153
    %174 = vmatmul.f32.gmra.mxu0 %v129
    %v175 = vpop.f32.mrf.mxu0
    %v176 = vadd.f32 %v91, %v175
    %177 = vmatmul.f32.gmra.mxu0 %v132
    %v178 = vpop.f32.mrf.mxu0
    %v179 = vadd.f32 %v96, %v178
    %180 = vmatmul.f32.gmra.mxu0 %v135
    %v181 = vpop.f32.mrf.mxu0
    %v182 = vadd.f32 %v101, %v181
    %183 = vmatmul.f32.gmra.mxu0 %v138
    %v184 = vpop.f32.mrf.mxu0
    %v185 = vadd.f32 %v106, %v184
    %186 = vmatmul.f32.gmra.mxu0 %v141
    %v187 = vpop.f32.mrf.mxu0
    %v188 = vadd.f32 %v111, %v187
    %189 = vmatmul.f32.gmra.mxu0 %v144
    %v190 = vpop.f32.mrf.mxu0
    %v191 = vadd.f32 %v116, %v190
    %192 = vmatmul.f32.gmra.mxu0 %v147
    %v193 = vpop.f32.mrf.mxu0
    %v194 = vadd.f32 %v121, %v193
    %195 = vmatmul.f32.gmra.mxu0 %v150
    %v196 = vpop.f32.mrf.mxu0
    %v197 = vadd.f32 %v126, %v196
    %198 = vdwg.mxu0
    %vm199 = vcmask 64512
    %v201 = vsel %vm199, %v65, 0
    %203 = vmatpush.msra.mxu0 0.0
    %204 = vmatpush.msra.mxu0 0.0
    %205 = vmatpush.msra.mxu0 0.0
    %206 = vmatpush.msra.mxu0 0.0
    %207 = vmatpush.msra.mxu0 0.0
    %208 = vmatpush.msra.mxu0 0.0
    %209 = vmatpush.msra.mxu0 0.0
    %210 = vmatpush.msra.mxu0 0.0
    %211 = vmatpush.msra.mxu0 0.0
    %212 = vmatpush.msra.mxu0 0.0
    %213 = vmatpush.msra.mxu0 0.0
    %214 = vmatpush.msra.mxu0 0.0
    %215 = vmatpush.msra.mxu0 0.0
    %216 = vmatpush.msra.mxu0 0.0
    %217 = vmatpush.msra.mxu0 0.0
    %218 = vmatpush.msra.mxu0 %v176
    %219 = vmatmul.f32.gmra.mxu0 %v201
    %v220 = vpop.f32.mrf.mxu0
    %v221 = vadd.f32 0.0, %v220
    %222 = vdwg.mxu0
    %223 = vrot.lane.b32.xlu0 %v65, 120
    %v224 = vpop.permute.xlu0 %223
    %v225 = vsel %vm199, %v224, 0
    %227 = vmatpush.msra.mxu0 0.0
    %228 = vmatpush.msra.mxu0 0.0
    %229 = vmatpush.msra.mxu0 0.0
    %230 = vmatpush.msra.mxu0 0.0
    %231 = vmatpush.msra.mxu0 0.0
    %232 = vmatpush.msra.mxu0 0.0
    %233 = vmatpush.msra.mxu0 0.0
    %234 = vmatpush.msra.mxu0 0.0
    %235 = vmatpush.msra.mxu0 0.0
    %236 = vmatpush.msra.mxu0 0.0
    %237 = vmatpush.msra.mxu0 0.0
    %238 = vmatpush.msra.mxu0 0.0
    %239 = vmatpush.msra.mxu0 0.0
    %240 = vmatpush.msra.mxu0 0.0
    %241 = vmatpush.msra.mxu0 0.0
    %242 = vmatpush.msra.mxu0 %v179
    %243 = vmatmul.f32.gmra.mxu0 %v225
    %v244 = vpop.f32.mrf.mxu0
    %v245 = vadd.f32 0.0, %v244
    %246 = vdwg.mxu0
    %247 = vrot.lane.b32.xlu0 %v65, 112
    %v248 = vpop.permute.xlu0 %247
    %v249 = vsel %vm199, %v248, 0
    %251 = vmatpush.msra.mxu0 0.0
    %252 = vmatpush.msra.mxu0 0.0
    %253 = vmatpush.msra.mxu0 0.0
    %254 = vmatpush.msra.mxu0 0.0
    %255 = vmatpush.msra.mxu0 0.0
    %256 = vmatpush.msra.mxu0 0.0
    %257 = vmatpush.msra.mxu0 0.0
    %258 = vmatpush.msra.mxu0 0.0
    %259 = vmatpush.msra.mxu0 0.0
    %260 = vmatpush.msra.mxu0 0.0
    %261 = vmatpush.msra.mxu0 0.0
    %262 = vmatpush.msra.mxu0 0.0
    %263 = vmatpush.msra.mxu0 0.0
    %264 = vmatpush.msra.mxu0 0.0
    %265 = vmatpush.msra.mxu0 0.0
    %266 = vmatpush.msra.mxu0 %v182
    %267 = vmatmul.f32.gmra.mxu0 %v249
    %v268 = vpop.f32.mrf.mxu0
    %v269 = vadd.f32 0.0, %v268
    %270 = vdwg.mxu0
    %271 = vrot.lane.b32.xlu0 %v65, 104
    %v272 = vpop.permute.xlu0 %271
    %v273 = vsel %vm199, %v272, 0
    %275 = vmatpush.msra.mxu0 0.0
    %276 = vmatpush.msra.mxu0 0.0
    %277 = vmatpush.msra.mxu0 0.0
    %278 = vmatpush.msra.mxu0 0.0
    %279 = vmatpush.msra.mxu0 0.0
    %280 = vmatpush.msra.mxu0 0.0
    %281 = vmatpush.msra.mxu0 0.0
    %282 = vmatpush.msra.mxu0 0.0
    %283 = vmatpush.msra.mxu0 0.0
    %284 = vmatpush.msra.mxu0 0.0
    %285 = vmatpush.msra.mxu0 0.0
    %286 = vmatpush.msra.mxu0 0.0
    %287 = vmatpush.msra.mxu0 0.0
    %288 = vmatpush.msra.mxu0 0.0
    %289 = vmatpush.msra.mxu0 0.0
    %290 = vmatpush.msra.mxu0 %v185
    %291 = vmatmul.f32.gmra.mxu0 %v273
    %v292 = vpop.f32.mrf.mxu0
    %v293 = vadd.f32 0.0, %v292
    %294 = vdwg.mxu0
    %296 = vrot.lane.b32.xlu0 %v176, 120
    %v297 = vpop.permute.xlu0 %296
    %v300 = vsel %vm199, %v68, 0
    %302 = vmatpush.msra.mxu0 0.0
    %303 = vmatpush.msra.mxu0 0.0
    %304 = vmatpush.msra.mxu0 0.0
    %305 = vmatpush.msra.mxu0 0.0
    %306 = vmatpush.msra.mxu0 0.0
    %307 = vmatpush.msra.mxu0 0.0
    %308 = vmatpush.msra.mxu0 0.0
    %309 = vmatpush.msra.mxu0 0.0
    %310 = vmatpush.msra.mxu0 0.0
    %311 = vmatpush.msra.mxu0 0.0
    %312 = vmatpush.msra.mxu0 0.0
    %313 = vmatpush.msra.mxu0 0.0
    %314 = vmatpush.msra.mxu0 0.0
    %315 = vmatpush.msra.mxu0 0.0
    %316 = vmatpush.msra.mxu0 0.0
    %317 = vmatpush.msra.mxu0 %v297
    %318 = vmatmul.f32.gmra.mxu0 %v300
    %v319 = vpop.f32.mrf.mxu0
    %v320 = vadd.f32 0.0, %v319
    %321 = vdwg.mxu0
    %322 = vrot.lane.b32.xlu0 %v68, 120
    %v323 = vpop.permute.xlu0 %322
    %325 = vrot.lane.b32.xlu0 %v179, 120
    %v326 = vpop.permute.xlu0 %325
    %v328 = vsel %vm199, %v323, 0
    %330 = vmatpush.msra.mxu0 0.0
    %331 = vmatpush.msra.mxu0 0.0
    %332 = vmatpush.msra.mxu0 0.0
    %333 = vmatpush.msra.mxu0 0.0
    %334 = vmatpush.msra.mxu0 0.0
    %335 = vmatpush.msra.mxu0 0.0
    %336 = vmatpush.msra.mxu0 0.0
    %337 = vmatpush.msra.mxu0 0.0
    %338 = vmatpush.msra.mxu0 0.0
    %339 = vmatpush.msra.mxu0 0.0
    %340 = vmatpush.msra.mxu0 0.0
    %341 = vmatpush.msra.mxu0 0.0
    %342 = vmatpush.msra.mxu0 0.0
    %343 = vmatpush.msra.mxu0 0.0
    %344 = vmatpush.msra.mxu0 0.0
    %345 = vmatpush.msra.mxu0 %v326
    %346 = vmatmul.f32.gmra.mxu0 %v328
    %v347 = vpop.f32.mrf.mxu0
    %v348 = vadd.f32 0.0, %v347
    %349 = vdwg.mxu0
    %350 = vrot.lane.b32.xlu0 %v68, 112
    %v351 = vpop.permute.xlu0 %350
    %353 = vrot.lane.b32.xlu0 %v182, 120
    %v354 = vpop.permute.xlu0 %353
    %v356 = vsel %vm199, %v351, 0
    %358 = vmatpush.msra.mxu0 0.0
    %359 = vmatpush.msra.mxu0 0.0
    %360 = vmatpush.msra.mxu0 0.0
    %361 = vmatpush.msra.mxu0 0.0
    %362 = vmatpush.msra.mxu0 0.0
    %363 = vmatpush.msra.mxu0 0.0
    %364 = vmatpush.msra.mxu0 0.0
    %365 = vmatpush.msra.mxu0 0.0
    %366 = vmatpush.msra.mxu0 0.0
    %367 = vmatpush.msra.mxu0 0.0
    %368 = vmatpush.msra.mxu0 0.0
    %369 = vmatpush.msra.mxu0 0.0
    %370 = vmatpush.msra.mxu0 0.0
    %371 = vmatpush.msra.mxu0 0.0
    %372 = vmatpush.msra.mxu0 0.0
    %373 = vmatpush.msra.mxu0 %v354
    %374 = vmatmul.f32.gmra.mxu0 %v356
    %v375 = vpop.f32.mrf.mxu0
    %v376 = vadd.f32 0.0, %v375
    %377 = vdwg.mxu0
    %378 = vrot.lane.b32.xlu0 %v68, 104
    %v379 = vpop.permute.xlu0 %378
    %381 = vrot.lane.b32.xlu0 %v185, 120
    %v382 = vpop.permute.xlu0 %381
    %v384 = vsel %vm199, %v379, 0
    %386 = vmatpush.msra.mxu0 0.0
    %387 = vmatpush.msra.mxu0 0.0
    %388 = vmatpush.msra.mxu0 0.0
    %389 = vmatpush.msra.mxu0 0.0
    %390 = vmatpush.msra.mxu0 0.0
    %391 = vmatpush.msra.mxu0 0.0
    %392 = vmatpush.msra.mxu0 0.0
    %393 = vmatpush.msra.mxu0 0.0
    %394 = vmatpush.msra.mxu0 0.0
    %395 = vmatpush.msra.mxu0 0.0
    %396 = vmatpush.msra.mxu0 0.0
    %397 = vmatpush.msra.mxu0 0.0
    %398 = vmatpush.msra.mxu0 0.0
    %399 = vmatpush.msra.mxu0 0.0
    %400 = vmatpush.msra.mxu0 0.0
    %401 = vmatpush.msra.mxu0 %v382
    %402 = vmatmul.f32.gmra.mxu0 %v384
    %v403 = vpop.f32.mrf.mxu0
    %v404 = vadd.f32 0.0, %v403
    %405 = vdwg.mxu0
    %v406 = vsel %vm199, %v221, -inf
    %407 = vmax.xlane.f32.xlu0 %v406
    %v408 = vpop.xlane.xlu0 %407
    %v409 = vsel %vm199, %v245, -inf
    %410 = vmax.xlane.f32.xlu0 %v409
    %v411 = vpop.xlane.xlu0 %410
    %v412 = vsel %vm199, %v269, -inf
    %413 = vmax.xlane.f32.xlu0 %v412
    %v414 = vpop.xlane.xlu0 %413
    %v415 = vsel %vm199, %v293, -inf
    %416 = vmax.xlane.f32.xlu0 %v415
    %v417 = vpop.xlane.xlu0 %416
    %v418 = vsel %vm199, %v320, -inf
    %419 = vmax.xlane.f32.xlu0 %v418
    %v420 = vpop.xlane.xlu0 %419
    %v421 = vsel %vm199, %v348, -inf
    %422 = vmax.xlane.f32.xlu0 %v421
    %v423 = vpop.xlane.xlu0 %422
    %v424 = vsel %vm199, %v376, -inf
    %425 = vmax.xlane.f32.xlu0 %v424
    %v426 = vpop.xlane.xlu0 %425
    %v427 = vsel %vm199, %v404, -inf
    %428 = vmax.xlane.f32.xlu0 %v427
    %v429 = vpop.xlane.xlu0 %428
    %v430 = vsub.f32 %v221, %v408
    %v431 = vsub.f32 %v245, %v411
    %v432 = vsub.f32 %v269, %v414
    %v433 = vsub.f32 %v293, %v417
    %v434 = vsub.f32 %v320, %v420
    %v435 = vsub.f32 %v348, %v423
    %v436 = vsub.f32 %v376, %v426
    %v437 = vsub.f32 %v404, %v429
    %v438 = vmul.f32 %v430, 1.442695
    %v439 = vpow.pop %v438
    %v440 = vmul.f32 %v431, 1.442695
    %v441 = vpow.pop %v440
    %v442 = vmul.f32 %v432, 1.442695
    %v443 = vpow.pop %v442
    %v444 = vmul.f32 %v433, 1.442695
    %v445 = vpow.pop %v444
    %v446 = vmul.f32 %v434, 1.442695
    %v447 = vpow.pop %v446
    %v448 = vmul.f32 %v435, 1.442695
    %v449 = vpow.pop %v448
    %v450 = vmul.f32 %v436, 1.442695
    %v451 = vpow.pop %v450
    %v452 = vmul.f32 %v437, 1.442695
    %v453 = vpow.pop %v452
    %v454 = vsel %vm199, %v439, 0.0
    %455 = vadd.xlane.f32.xlu0 %v454
    %v456 = vpop.xlane.xlu0 %455
    %v457 = vsel %vm199, %v441, 0.0
    %458 = vadd.xlane.f32.xlu0 %v457
    %v459 = vpop.xlane.xlu0 %458
    %v460 = vsel %vm199, %v443, 0.0
    %461 = vadd.xlane.f32.xlu0 %v460
    %v462 = vpop.xlane.xlu0 %461
    %v463 = vsel %vm199, %v445, 0.0
    %464 = vadd.xlane.f32.xlu0 %v463
    %v465 = vpop.xlane.xlu0 %464
    %v466 = vsel %vm199, %v447, 0.0
    %467 = vadd.xlane.f32.xlu0 %v466
    %v468 = vpop.xlane.xlu0 %467
    %v469 = vsel %vm199, %v449, 0.0
    %470 = vadd.xlane.f32.xlu0 %v469
    %v471 = vpop.xlane.xlu0 %470
    %v472 = vsel %vm199, %v451, 0.0
    %473 = vadd.xlane.f32.xlu0 %v472
    %v474 = vpop.xlane.xlu0 %473
    %v475 = vsel %vm199, %v453, 0.0
    %476 = vadd.xlane.f32.xlu0 %v475
    %v477 = vpop.xlane.xlu0 %476
    %v478 = vrcp.pop %v456
    %v479 = vrcp.pop %v459
    %v480 = vrcp.pop %v462
    %v481 = vrcp.pop %v465
    %v482 = vrcp.pop %v468
    %v483 = vrcp.pop %v471
    %v484 = vrcp.pop %v474
    %v485 = vrcp.pop %v477
    %v486 = vmul.f32 %v439, %v478
    %v487 = vmul.f32 %v441, %v479
    %v488 = vmul.f32 %v443, %v480
    %v489 = vmul.f32 %v445, %v481
    %v490 = vmul.f32 %v447, %v482
    %v491 = vmul.f32 %v449, %v483
    %v492 = vmul.f32 %v451, %v484
    %v493 = vmul.f32 %v453, %v485
    %v495 = vsel %vm199, %v188, 0
    %v498 = vsel %vm199, %v486, 0
    %500 = vmatpush.xpose.msra.mxu0 0.0
    %501 = vmatpush.xpose.msra.mxu0 0.0
    %502 = vmatpush.xpose.msra.mxu0 0.0
    %503 = vmatpush.xpose.msra.mxu0 0.0
    %504 = vmatpush.xpose.msra.mxu0 0.0
    %505 = vmatpush.xpose.msra.mxu0 0.0
    %506 = vmatpush.xpose.msra.mxu0 0.0
    %507 = vmatpush.xpose.msra.mxu0 0.0
    %508 = vmatpush.xpose.msra.mxu0 0.0
    %509 = vmatpush.xpose.msra.mxu0 0.0
    %510 = vmatpush.xpose.msra.mxu0 0.0
    %511 = vmatpush.xpose.msra.mxu0 0.0
    %512 = vmatpush.xpose.msra.mxu0 0.0
    %513 = vmatpush.xpose.msra.mxu0 0.0
    %514 = vmatpush.xpose.msra.mxu0 0.0
    %515 = vmatpush.xpose.msra.mxu0 %v498
    %516 = vmatmul.f32.gmra.mxu0 %v495
    %v517 = vpop.f32.mrf.mxu0
    %v518 = vadd.f32 0.0, %v517
    %519 = vdwg.mxu0
    %v521 = vsel %vm199, %v191, 0
    %v524 = vsel %vm199, %v487, 0
    %526 = vmatpush.xpose.msra.mxu0 0.0
    %527 = vmatpush.xpose.msra.mxu0 0.0
    %528 = vmatpush.xpose.msra.mxu0 0.0
    %529 = vmatpush.xpose.msra.mxu0 0.0
    %530 = vmatpush.xpose.msra.mxu0 0.0
    %531 = vmatpush.xpose.msra.mxu0 0.0
    %532 = vmatpush.xpose.msra.mxu0 0.0
    %533 = vmatpush.xpose.msra.mxu0 0.0
    %534 = vmatpush.xpose.msra.mxu0 0.0
    %535 = vmatpush.xpose.msra.mxu0 0.0
    %536 = vmatpush.xpose.msra.mxu0 0.0
    %537 = vmatpush.xpose.msra.mxu0 0.0
    %538 = vmatpush.xpose.msra.mxu0 0.0
    %539 = vmatpush.xpose.msra.mxu0 0.0
    %540 = vmatpush.xpose.msra.mxu0 0.0
    %541 = vmatpush.xpose.msra.mxu0 %v524
    %542 = vmatmul.f32.gmra.mxu0 %v521
    %v543 = vpop.f32.mrf.mxu0
    %v544 = vadd.f32 0.0, %v543
    %545 = vdwg.mxu0
    %v547 = vsel %vm199, %v194, 0
    %v550 = vsel %vm199, %v488, 0
    %552 = vmatpush.xpose.msra.mxu0 0.0
    %553 = vmatpush.xpose.msra.mxu0 0.0
    %554 = vmatpush.xpose.msra.mxu0 0.0
    %555 = vmatpush.xpose.msra.mxu0 0.0
    %556 = vmatpush.xpose.msra.mxu0 0.0
    %557 = vmatpush.xpose.msra.mxu0 0.0
    %558 = vmatpush.xpose.msra.mxu0 0.0
    %559 = vmatpush.xpose.msra.mxu0 0.0
    %560 = vmatpush.xpose.msra.mxu0 0.0
    %561 = vmatpush.xpose.msra.mxu0 0.0
    %562 = vmatpush.xpose.msra.mxu0 0.0
    %563 = vmatpush.xpose.msra.mxu0 0.0
    %564 = vmatpush.xpose.msra.mxu0 0.0
    %565 = vmatpush.xpose.msra.mxu0 0.0
    %566 = vmatpush.xpose.msra.mxu0 0.0
    %567 = vmatpush.xpose.msra.mxu0 %v550
    %568 = vmatmul.f32.gmra.mxu0 %v547
    %v569 = vpop.f32.mrf.mxu0
    %v570 = vadd.f32 0.0, %v569
    %571 = vdwg.mxu0
    %v573 = vsel %vm199, %v197, 0
    %v576 = vsel %vm199, %v489, 0
    %578 = vmatpush.xpose.msra.mxu0 0.0
    %579 = vmatpush.xpose.msra.mxu0 0.0
    %580 = vmatpush.xpose.msra.mxu0 0.0
    %581 = vmatpush.xpose.msra.mxu0 0.0
    %582 = vmatpush.xpose.msra.mxu0 0.0
    %583 = vmatpush.xpose.msra.mxu0 0.0
    %584 = vmatpush.xpose.msra.mxu0 0.0
    %585 = vmatpush.xpose.msra.mxu0 0.0
    %586 = vmatpush.xpose.msra.mxu0 0.0
    %587 = vmatpush.xpose.msra.mxu0 0.0
    %588 = vmatpush.xpose.msra.mxu0 0.0
    %589 = vmatpush.xpose.msra.mxu0 0.0
    %590 = vmatpush.xpose.msra.mxu0 0.0
    %591 = vmatpush.xpose.msra.mxu0 0.0
    %592 = vmatpush.xpose.msra.mxu0 0.0
    %593 = vmatpush.xpose.msra.mxu0 %v576
    %594 = vmatmul.f32.gmra.mxu0 %v573
    %v595 = vpop.f32.mrf.mxu0
    %v596 = vadd.f32 0.0, %v595
    %597 = vdwg.mxu0
    %598 = vrot.lane.b32.xlu0 %v188, 120
    %v599 = vpop.permute.xlu0 %598
    %v600 = vsel %vm199, %v599, 0
    %v603 = vsel %vm199, %v490, 0
    %605 = vmatpush.xpose.msra.mxu0 0.0
    %606 = vmatpush.xpose.msra.mxu0 0.0
    %607 = vmatpush.xpose.msra.mxu0 0.0
    %608 = vmatpush.xpose.msra.mxu0 0.0
    %609 = vmatpush.xpose.msra.mxu0 0.0
    %610 = vmatpush.xpose.msra.mxu0 0.0
    %611 = vmatpush.xpose.msra.mxu0 0.0
    %612 = vmatpush.xpose.msra.mxu0 0.0
    %613 = vmatpush.xpose.msra.mxu0 0.0
    %614 = vmatpush.xpose.msra.mxu0 0.0
    %615 = vmatpush.xpose.msra.mxu0 0.0
    %616 = vmatpush.xpose.msra.mxu0 0.0
    %617 = vmatpush.xpose.msra.mxu0 0.0
    %618 = vmatpush.xpose.msra.mxu0 0.0
    %619 = vmatpush.xpose.msra.mxu0 0.0
    %620 = vmatpush.xpose.msra.mxu0 %v603
    %621 = vmatmul.f32.gmra.mxu0 %v600
    %v622 = vpop.f32.mrf.mxu0
    %v623 = vadd.f32 0.0, %v622
    %624 = vdwg.mxu0
    %625 = vrot.lane.b32.xlu0 %v191, 120
    %v626 = vpop.permute.xlu0 %625
    %v627 = vsel %vm199, %v626, 0
    %v630 = vsel %vm199, %v491, 0
    %632 = vmatpush.xpose.msra.mxu0 0.0
    %633 = vmatpush.xpose.msra.mxu0 0.0
    %634 = vmatpush.xpose.msra.mxu0 0.0
    %635 = vmatpush.xpose.msra.mxu0 0.0
    %636 = vmatpush.xpose.msra.mxu0 0.0
    %637 = vmatpush.xpose.msra.mxu0 0.0
    %638 = vmatpush.xpose.msra.mxu0 0.0
    %639 = vmatpush.xpose.msra.mxu0 0.0
    %640 = vmatpush.xpose.msra.mxu0 0.0
    %641 = vmatpush.xpose.msra.mxu0 0.0
    %642 = vmatpush.xpose.msra.mxu0 0.0
    %643 = vmatpush.xpose.msra.mxu0 0.0
    %644 = vmatpush.xpose.msra.mxu0 0.0
    %645 = vmatpush.xpose.msra.mxu0 0.0
    %646 = vmatpush.xpose.msra.mxu0 0.0
    %647 = vmatpush.xpose.msra.mxu0 %v630
    %648 = vmatmul.f32.gmra.mxu0 %v627
    %v649 = vpop.f32.mrf.mxu0
    %v650 = vadd.f32 0.0, %v649
    %651 = vdwg.mxu0
    %652 = vrot.lane.b32.xlu0 %v194, 120
    %v653 = vpop.permute.xlu0 %652
    %v654 = vsel %vm199, %v653, 0
    %v657 = vsel %vm199, %v492, 0
    %659 = vmatpush.xpose.msra.mxu0 0.0
    %660 = vmatpush.xpose.msra.mxu0 0.0
    %661 = vmatpush.xpose.msra.mxu0 0.0
    %662 = vmatpush.xpose.msra.mxu0 0.0
    %663 = vmatpush.xpose.msra.mxu0 0.0
    %664 = vmatpush.xpose.msra.mxu0 0.0
    %665 = vmatpush.xpose.msra.mxu0 0.0
    %666 = vmatpush.xpose.msra.mxu0 0.0
    %667 = vmatpush.xpose.msra.mxu0 0.0
    %668 = vmatpush.xpose.msra.mxu0 0.0
    %669 = vmatpush.xpose.msra.mxu0 0.0
    %670 = vmatpush.xpose.msra.mxu0 0.0
    %671 = vmatpush.xpose.msra.mxu0 0.0
    %672 = vmatpush.xpose.msra.mxu0 0.0
    %673 = vmatpush.xpose.msra.mxu0 0.0
    %674 = vmatpush.xpose.msra.mxu0 %v657
    %675 = vmatmul.f32.gmra.mxu0 %v654
    %v676 = vpop.f32.mrf.mxu0
    %v677 = vadd.f32 0.0, %v676
    %678 = vdwg.mxu0
    %679 = vrot.lane.b32.xlu0 %v197, 120
    %v680 = vpop.permute.xlu0 %679
    %v681 = vsel %vm199, %v680, 0
    %v684 = vsel %vm199, %v493, 0
    %686 = vmatpush.xpose.msra.mxu0 0.0
    %687 = vmatpush.xpose.msra.mxu0 0.0
    %688 = vmatpush.xpose.msra.mxu0 0.0
    %689 = vmatpush.xpose.msra.mxu0 0.0
    %690 = vmatpush.xpose.msra.mxu0 0.0
    %691 = vmatpush.xpose.msra.mxu0 0.0
    %692 = vmatpush.xpose.msra.mxu0 0.0
    %693 = vmatpush.xpose.msra.mxu0 0.0
    %694 = vmatpush.xpose.msra.mxu0 0.0
    %695 = vmatpush.xpose.msra.mxu0 0.0
    %696 = vmatpush.xpose.msra.mxu0 0.0
    %697 = vmatpush.xpose.msra.mxu0 0.0
    %698 = vmatpush.xpose.msra.mxu0 0.0
    %699 = vmatpush.xpose.msra.mxu0 0.0
    %700 = vmatpush.xpose.msra.mxu0 0.0
    %701 = vmatpush.xpose.msra.mxu0 %v684
    %702 = vmatmul.f32.gmra.mxu0 %v681
    %v703 = vpop.f32.mrf.mxu0
    %v704 = vadd.f32 0.0, %v703
    %705 = vdwg.mxu0
    %710 = vrot.lane.b32.xlu0 %v623, 8
    %v711 = vpop.permute.xlu0 %710
    %712 = vrot.lane.b32.xlu0 %v650, 8
    %v713 = vpop.permute.xlu0 %712
    %714 = vrot.lane.b32.xlu0 %v677, 8
    %v715 = vpop.permute.xlu0 %714
    %716 = vrot.lane.b32.xlu0 %v704, 8
    %v717 = vpop.permute.xlu0 %716
    %v722 = vsel %vm199, %v518, %v711
    %v723 = vsel %vm199, %v544, %v713
    %v724 = vsel %vm199, %v570, %v715
    %v725 = vsel %vm199, %v596, %v717
    %726 = vxpose.xlu0.b32.start [1/16] %v722, 128
    %727 = vxpose.xlu0.b32.cont [2/16] %v723, 128
    %728 = vxpose.xlu0.b32.cont [3/16] %v724, 128
    %729 = vxpose.xlu0.b32.cont [4/16] %v725, 128
    %730 = vxpose.xlu0.b32.cont [5/16] 0.0, 128
    %731 = vxpose.xlu0.b32.cont [6/16] 0.0, 128
    %732 = vxpose.xlu0.b32.cont [7/16] 0.0, 128
    %733 = vxpose.xlu0.b32.cont [8/16] 0.0, 128
    %734 = vxpose.xlu0.b32.cont [9/16] 0.0, 128
    %735 = vxpose.xlu0.b32.cont [10/16] 0.0, 128
    %736 = vxpose.xlu0.b32.cont [11/16] 0.0, 128
    %737 = vxpose.xlu0.b32.cont [12/16] 0.0, 128
    %738 = vxpose.xlu0.b32.cont [13/16] 0.0, 128
    %739 = vxpose.xlu0.b32.cont [14/16] 0.0, 128
    %740 = vxpose.xlu0.b32.cont [15/16] 0.0, 128
    %741 = vxpose.xlu0.b32.end [16/16] 0.0, 128
    %v742 = vpop.trf.xlu0
    %v743 = vpop.trf.xlu0
    %v744 = vpop.trf.xlu0
    %v745 = vpop.trf.xlu0
    %v746 = vpop.trf.xlu0
    %v747 = vpop.trf.xlu0
    %v748 = vpop.trf.xlu0
    %v749 = vpop.trf.xlu0
    %v750 = vpop.trf.xlu0
    %v751 = vpop.trf.xlu0
    %v752 = vpop.trf.xlu0
    %v753 = vpop.trf.xlu0
    %v754 = vpop.trf.xlu0
    %v755 = vpop.trf.xlu0
    %v756 = vpop.trf.xlu0
    %v757 = vpop.trf.xlu0
    %v758 = vld [vmem:[%s6] sm:$0xff]
    %v759 = vld [vmem:[%s6 + $0x8] sm:$0xff]
    %v760 = vld [vmem:[%s6 + $0x10] sm:$0xff]
    %v761 = vld [vmem:[%s6 + $0x18] sm:$0xff]
    %v762 = vld [vmem:[%s7] sm:$0x1]
    %v764 = vperm.slane %v762, 0
    %v767 = vsel %vm40, %v742, 0
    %v770 = vsel %vm40, %v743, 0
    %772 = vmatpush.msra.mxu0 0.0
    %773 = vmatpush.msra.mxu0 0.0
    %774 = vmatpush.msra.mxu0 0.0
    %775 = vmatpush.msra.mxu0 0.0
    %776 = vmatpush.msra.mxu0 0.0
    %777 = vmatpush.msra.mxu0 0.0
    %778 = vmatpush.msra.mxu0 0.0
    %779 = vmatpush.msra.mxu0 0.0
    %780 = vmatpush.msra.mxu0 0.0
    %781 = vmatpush.msra.mxu0 0.0
    %782 = vmatpush.msra.mxu0 0.0
    %783 = vmatpush.msra.mxu0 0.0
    %784 = vmatpush.msra.mxu0 %v761
    %785 = vmatpush.msra.mxu0 %v760
    %786 = vmatpush.msra.mxu0 %v759
    %787 = vmatpush.msra.mxu0 %v758
    %788 = vmatmul.f32.gmra.mxu0 %v767
    %v789 = vpop.f32.mrf.mxu0
    %v790 = vadd.f32 %v764, %v789
    %791 = vmatmul.f32.gmra.mxu0 %v770
    %v792 = vpop.f32.mrf.mxu0
    %v793 = vadd.f32 %v764, %v792
    %794 = vdwg.mxu0
    %795 = vst.msk [vmem:[#allocation2] sm:$0xff] %vm40, %v790
    %796 = vst.msk [vmem:[#allocation2 + $0x8] sm:$0xff] %vm40, %v793
    // Predicated region
    $region34: #{global_attention.1} parent=1 // pred_check
      _
    $region35: #{global_attention.1} parent=1 // pred_check_branch
      %798 = sbr.rel (0) target = $region37
    $region36: #{global_attention.1} parent=1 // pred_region
      %800 = vsyncadd [#allocation3], 0
      %s801 = sshll.u32 [#allocation2], 4
      %s802 = int_to_ptr.vmem [resolvable:$true] %s801
      %s803 = sshll.u32 %s8, 4
      %s804 = int_to_ptr.hbm [resolvable:$true] %s803
      %809 = dma.vmem_to_hbm [thread:$0]  %s802, 256, %s804, [#allocation3], 128, 128, 8
    $region37: #{global_attention.1} parent=1 // pred_fallthru
      _
    // Predicated region
    $region38: #{global_attention.1} parent=1 // pred_check
      _
    $region39: #{global_attention.1} parent=1 // pred_check_branch
      %811 = sbr.rel (0) target = $region41
    $region40: #{global_attention.1} parent=1 // pred_region
      %813 = dma.done [#allocation3], 256
    $region41: #{global_attention.1} parent=1 // pred_fallthru
      _
    %814 = vsyncpa [#allocation3], 1

</llo_original>
